<compile_context>
chip_gen: v5e
topology: v5e:2x2
jax: 0.10.0
libtpu: 0.0.40
codegen_flags: <defaults>
</compile_context>

<pallas_src>
import functools

import jax
import jax.numpy as jnp
from jax.experimental import pallas as pl
from jax.experimental.pallas import tpu as pltpu


def _qnet_kernel(x_ref,
                 w1_ref, b1_ref,
                 w2_ref, b2_ref,
                 w3_ref, b3_ref,
                 w4_ref, b4_ref,
                 w5_ref, b5_ref,
                 out_ref):
    """Whole 5-layer forward pass fused in one kernel (weights VMEM-resident)."""
    x = x_ref[...]                                           # bf16 [tb, S+A]

    # Layer 1: single K=(S+A) bf16 dot, f32 accumulation.
    h = jnp.dot(x, w1_ref[...], preferred_element_type=jnp.float32) + b1_ref[...]
    h = jnp.maximum(h, 0.0)

    # Layers 2-4: bf16 operands on the MXU, f32 accumulation + f32 elementwise.
    h = jnp.dot(h.astype(jnp.bfloat16), w2_ref[...],
                preferred_element_type=jnp.float32) + b2_ref[...]
    h = jnp.maximum(h, 0.0)

    h = jnp.dot(h.astype(jnp.bfloat16), w3_ref[...],
                preferred_element_type=jnp.float32) + b3_ref[...]
    h = jnp.maximum(h, 0.0)

    h = jnp.dot(h.astype(jnp.bfloat16), w4_ref[...],
                preferred_element_type=jnp.float32) + b4_ref[...]
    h = jnp.maximum(h, 0.0)

    # Layer 5 (128 -> 1): VPU multiply + lane reduction in f32 instead of a
    # degenerate N=1 MXU matmul.  w5_ref is a [1, 128] row, b5_ref a [1, 1].
    q = jnp.sum(h * w5_ref[...], axis=-1, keepdims=True) + b5_ref[...]
    out_ref[...] = q.astype(out_ref.dtype)


def _resident_spec(a):
    """Constant-block BlockSpec: weight/bias stays VMEM-resident over the grid.

    Default-arg capture avoids the late-binding-lambda bug."""
    return pl.BlockSpec(a.shape, lambda i, _ndim=a.ndim: (0,) * _ndim)


def prepare_qnet_params(params):
    """One-time parameter prep (done OUTSIDE the hot forward):
    cast matmul weights to bf16, biases to [1, out] f32 rows, w5 to a [1, 128]
    f32 row for the VPU final layer."""
    (w1, b1), (w2, b2), (w3, b3), (w4, b4), (w5, b5) = params
    return (
        w1.astype(jnp.bfloat16),                 # [S+A, 128]
        b1.reshape(1, -1).astype(jnp.float32),   # [1, 128]
        w2.astype(jnp.bfloat16),                 # [128, 128]
        b2.reshape(1, -1).astype(jnp.float32),
        w3.astype(jnp.bfloat16),
        b3.reshape(1, -1).astype(jnp.float32),
        w4.astype(jnp.bfloat16),
        b4.reshape(1, -1).astype(jnp.float32),
        w5.reshape(1, -1).astype(jnp.float32),   # [1, 128] row (VPU layer)
        b5.reshape(1, -1).astype(jnp.float32),   # [1, 1]
    )


@functools.partial(jax.jit, static_argnames=("block_b",))
def qnet_forward(state, action, prepared_params, *, block_b=4096):
    """state: [B, state_dim], action: [B, action_dim] -> q: [B, 1] (f32).

    block_b: batch rows per grid step.  Sweep 2048/4096/8192 for large B; the
    explicit 48 MiB VMEM limit keeps even 8192 safe on v5e/v6e and leaves
    headroom on v7x's 64 MiB VMEM.
    """
    # Fused input: trivial concat (B * (S+A) elements), cast once to bf16 so
    # the kernel's first dot consumes it directly and the DMA moves half the bytes.
    x = jnp.concatenate([state, action], axis=1).astype(jnp.bfloat16)
    B, in_dim = x.shape

    tb = B if B <= block_b else block_b
    grid = (pl.cdiv(B, tb),)

    in_specs = [pl.BlockSpec((tb, in_dim), lambda i: (i, 0))] + [
        _resident_spec(a) for a in prepared_params
    ]

    return pl.pallas_call(
        _qnet_kernel,
        out_shape=jax.ShapeDtypeStruct((B, 1), jnp.float32),
        grid=grid,
        in_specs=in_specs,
        out_specs=pl.BlockSpec((tb, 1), lambda i: (i, 0)),
        compiler_params=pltpu.CompilerParams(
            # Batch axis is independent -> shard across v7x's 2 TensorCores.
            # If a v7x trace shows one idle TC, switch to pltpu.CORE_PARALLEL.
            dimension_semantics=("parallel",),
            # Raise the scoped-VMEM limit (16 MiB default on v5e) so large
            # batch tiles fit; 48 MiB still leaves headroom on v7x (64 MiB).
            vmem_limit_bytes=48 * 1024 * 1024,
        ),
    )(x, *prepared_params)


def init_qnet_params(key, state_dim, action_dim, hidden=128):
    """Deterministic init mimicking PyTorch nn.Linear defaults
    (uniform(-1/sqrt(fan_in), 1/sqrt(fan_in))).  Weights stored as [in, out]."""
    dims = [state_dim + action_dim, hidden, hidden, hidden, hidden, 1]
    params = []
    for i in range(5):
        fan_in, fan_out = dims[i], dims[i + 1]
        key, kw, kb = jax.random.split(key, 3)
        bound = 1.0 / jnp.sqrt(jnp.float32(fan_in))
        w = jax.random.uniform(kw, (fan_in, fan_out), jnp.float32, -bound, bound)
        b = jax.random.uniform(kb, (fan_out,), jnp.float32, -bound, bound)
        params.append((w, b))
    return params


def qnet_reference(state, action, params):
    """Pure-JAX reference matching the kernel's numerics (bf16 dot operands,
    f32 accumulation, final layer in f32)."""
    x = jnp.concatenate([state, action], axis=1).astype(jnp.float32)
    for w, b in params[:-1]:
        x = jnp.dot(x.astype(jnp.bfloat16), w.astype(jnp.bfloat16),
                    preferred_element_type=jnp.float32) + b
        x = jnp.maximum(x, 0.0)
    w, b = params[-1]
    return x @ w + b


if __name__ == "__main__":
    state_dim, action_dim = 12, 4

    key = jax.random.PRNGKey(0)
    kp, ks, ka, ks2, ka2 = jax.random.split(key, 5)

    params = init_qnet_params(kp, state_dim, action_dim)
    prepared = prepare_qnet_params(params)

    # Small check (single grid step).
    batch = 8
    state = jax.random.normal(ks, (batch, state_dim), jnp.float32)
    action = jax.random.normal(ka, (batch, action_dim), jnp.float32)
    q = qnet_forward(state, action, prepared)
    jax.block_until_ready(q)
    q_ref = qnet_reference(state, action, params)
    assert q.shape == (batch, 1)
    assert jnp.allclose(q, q_ref, atol=2e-3, rtol=2e-3), (q, q_ref)

    # Multi-step grid with a partial last block (exercises edge padding).
    batch2 = 300
    state2 = jax.random.normal(ks2, (batch2, state_dim), jnp.float32)
    action2 = jax.random.normal(ka2, (batch2, action_dim), jnp.float32)
    q2 = qnet_forward(state2, action2, prepared, block_b=128)
    jax.block_until_ready(q2)
    q2_ref = qnet_reference(state2, action2, params)
    assert q2.shape == (batch2, 1)
    assert jnp.allclose(q2, q2_ref, atol=2e-3, rtol=2e-3), (q2, q2_ref)

    print("KERNEL_OK")
</pallas_src>

<mosaic_0001>
module attributes {stable_mosaic.version = 11 : i64} {
  func.func @_qnet_kernel(%arg0: i32, %arg1: memref<8x16xbf16, #tpu.memory_space<vmem>>, %arg2: memref<16x128xbf16, #tpu.memory_space<vmem>>, %arg3: memref<1x128xf32, #tpu.memory_space<vmem>>, %arg4: memref<128x128xbf16, #tpu.memory_space<vmem>>, %arg5: memref<1x128xf32, #tpu.memory_space<vmem>>, %arg6: memref<128x128xbf16, #tpu.memory_space<vmem>>, %arg7: memref<1x128xf32, #tpu.memory_space<vmem>>, %arg8: memref<128x128xbf16, #tpu.memory_space<vmem>>, %arg9: memref<1x128xf32, #tpu.memory_space<vmem>>, %arg10: memref<1x128xf32, #tpu.memory_space<vmem>>, %arg11: memref<1x1xf32, #tpu.memory_space<vmem>>, %arg12: memref<8x1xf32, #tpu.memory_space<vmem>>) attributes {dimension_semantics = [#tpu.dimension_semantics<parallel>], iteration_bounds = array<i64: 1>, scalar_prefetch = 0 : i64, scratch_operands = 0 : i64, tpu.core_type = #tpu.core_type<tc>, window_params = [{transform_indices = @transform_0, window_bounds = array<i64: 8, 16>}, {pipeline_mode = #tpu.pipeline_mode<synchronous>, transform_indices = @transform_1, window_bounds = array<i64: 16, 128>}, {pipeline_mode = #tpu.pipeline_mode<synchronous>, transform_indices = @transform_2, window_bounds = array<i64: 1, 128>}, {pipeline_mode = #tpu.pipeline_mode<synchronous>, transform_indices = @transform_3, window_bounds = array<i64: 128, 128>}, {pipeline_mode = #tpu.pipeline_mode<synchronous>, transform_indices = @transform_4, window_bounds = array<i64: 1, 128>}, {pipeline_mode = #tpu.pipeline_mode<synchronous>, transform_indices = @transform_5, window_bounds = array<i64: 128, 128>}, {pipeline_mode = #tpu.pipeline_mode<synchronous>, transform_indices = @transform_6, window_bounds = array<i64: 1, 128>}, {pipeline_mode = #tpu.pipeline_mode<synchronous>, transform_indices = @transform_7, window_bounds = array<i64: 128, 128>}, {pipeline_mode = #tpu.pipeline_mode<synchronous>, transform_indices = @transform_8, window_bounds = array<i64: 1, 128>}, {pipeline_mode = #tpu.pipeline_mode<synchronous>, transform_indices = @transform_9, window_bounds = array<i64: 1, 128>}, {pipeline_mode = #tpu.pipeline_mode<synchronous>, transform_indices = @transform_10, window_bounds = array<i64: 1, 1>}, {transform_indices = @transform_11, window_bounds = array<i64: 8, 1>}]} {
    %c0 = arith.constant 0 : index
    %c0_0 = arith.constant 0 : index
    %0 = vector.load %arg1[%c0, %c0_0] : memref<8x16xbf16, #tpu.memory_space<vmem>>, vector<8x16xbf16>
    %c0_1 = arith.constant 0 : index
    %c0_2 = arith.constant 0 : index
    %1 = vector.load %arg2[%c0_1, %c0_2] : memref<16x128xbf16, #tpu.memory_space<vmem>>, vector<16x128xbf16>
    %cst = arith.constant dense<0.000000e+00> : vector<8x128xf32>
    %2 = tpu.matmul %0, %1, %cst {dimension_numbers = #tpu.dot_dimension_numbers<[1], [0], [0], [1], [0, 0, 1, 1], [], []>} : vector<8x16xbf16>, vector<16x128xbf16>, vector<8x128xf32> -> vector<8x128xf32>
    %c0_3 = arith.constant 0 : index
    %c0_4 = arith.constant 0 : index
    %3 = vector.load %arg3[%c0_3, %c0_4] : memref<1x128xf32, #tpu.memory_space<vmem>>, vector<1x128xf32>
    %4 = vector.broadcast %3 : vector<1x128xf32> to vector<8x128xf32>
    %5 = arith.addf %2, %4 : vector<8x128xf32>
    %cst_5 = arith.constant 0.000000e+00 : f32
    %6 = vector.broadcast %cst_5 : f32 to vector<8x128xf32>
    %7 = arith.maximumf %5, %6 : vector<8x128xf32>
    %8 = arith.truncf %7 : vector<8x128xf32> to vector<8x128xbf16>
    %c0_6 = arith.constant 0 : index
    %c0_7 = arith.constant 0 : index
    %9 = vector.load %arg4[%c0_6, %c0_7] : memref<128x128xbf16, #tpu.memory_space<vmem>>, vector<128x128xbf16>
    %cst_8 = arith.constant dense<0.000000e+00> : vector<8x128xf32>
    %10 = tpu.matmul %8, %9, %cst_8 {dimension_numbers = #tpu.dot_dimension_numbers<[1], [0], [0], [1], [0, 0, 1, 1], [], []>} : vector<8x128xbf16>, vector<128x128xbf16>, vector<8x128xf32> -> vector<8x128xf32>
    %c0_9 = arith.constant 0 : index
    %c0_10 = arith.constant 0 : index
    %11 = vector.load %arg5[%c0_9, %c0_10] : memref<1x128xf32, #tpu.memory_space<vmem>>, vector<1x128xf32>
    %12 = vector.broadcast %11 : vector<1x128xf32> to vector<8x128xf32>
    %13 = arith.addf %10, %12 : vector<8x128xf32>
    %cst_11 = arith.constant 0.000000e+00 : f32
    %14 = vector.broadcast %cst_11 : f32 to vector<8x128xf32>
    %15 = arith.maximumf %13, %14 : vector<8x128xf32>
    %16 = arith.truncf %15 : vector<8x128xf32> to vector<8x128xbf16>
    %c0_12 = arith.constant 0 : index
    %c0_13 = arith.constant 0 : index
    %17 = vector.load %arg6[%c0_12, %c0_13] : memref<128x128xbf16, #tpu.memory_space<vmem>>, vector<128x128xbf16>
    %cst_14 = arith.constant dense<0.000000e+00> : vector<8x128xf32>
    %18 = tpu.matmul %16, %17, %cst_14 {dimension_numbers = #tpu.dot_dimension_numbers<[1], [0], [0], [1], [0, 0, 1, 1], [], []>} : vector<8x128xbf16>, vector<128x128xbf16>, vector<8x128xf32> -> vector<8x128xf32>
    %c0_15 = arith.constant 0 : index
    %c0_16 = arith.constant 0 : index
    %19 = vector.load %arg7[%c0_15, %c0_16] : memref<1x128xf32, #tpu.memory_space<vmem>>, vector<1x128xf32>
    %20 = vector.broadcast %19 : vector<1x128xf32> to vector<8x128xf32>
    %21 = arith.addf %18, %20 : vector<8x128xf32>
    %cst_17 = arith.constant 0.000000e+00 : f32
    %22 = vector.broadcast %cst_17 : f32 to vector<8x128xf32>
    %23 = arith.maximumf %21, %22 : vector<8x128xf32>
    %24 = arith.truncf %23 : vector<8x128xf32> to vector<8x128xbf16>
    %c0_18 = arith.constant 0 : index
    %c0_19 = arith.constant 0 : index
    %25 = vector.load %arg8[%c0_18, %c0_19] : memref<128x128xbf16, #tpu.memory_space<vmem>>, vector<128x128xbf16>
    %cst_20 = arith.constant dense<0.000000e+00> : vector<8x128xf32>
    %26 = tpu.matmul %24, %25, %cst_20 {dimension_numbers = #tpu.dot_dimension_numbers<[1], [0], [0], [1], [0, 0, 1, 1], [], []>} : vector<8x128xbf16>, vector<128x128xbf16>, vector<8x128xf32> -> vector<8x128xf32>
    %c0_21 = arith.constant 0 : index
    %c0_22 = arith.constant 0 : index
    %27 = vector.load %arg9[%c0_21, %c0_22] : memref<1x128xf32, #tpu.memory_space<vmem>>, vector<1x128xf32>
    %28 = vector.broadcast %27 : vector<1x128xf32> to vector<8x128xf32>
    %29 = arith.addf %26, %28 : vector<8x128xf32>
    %cst_23 = arith.constant 0.000000e+00 : f32
    %30 = vector.broadcast %cst_23 : f32 to vector<8x128xf32>
    %31 = arith.maximumf %29, %30 : vector<8x128xf32>
    %c0_24 = arith.constant 0 : index
    %c0_25 = arith.constant 0 : index
    %32 = vector.load %arg10[%c0_24, %c0_25] : memref<1x128xf32, #tpu.memory_space<vmem>>, vector<1x128xf32>
    %33 = vector.broadcast %32 : vector<1x128xf32> to vector<8x128xf32>
    %34 = arith.mulf %31, %33 : vector<8x128xf32>
    %cst_26 = arith.constant dense<0.000000e+00> : vector<8xf32>
    %35 = vector.multi_reduction <add>, %34, %cst_26 [1] : vector<8x128xf32> to vector<8xf32>
    %36 = vector.shape_cast %35 : vector<8xf32> to vector<8x1xf32>
    %c0_27 = arith.constant 0 : index
    %c0_28 = arith.constant 0 : index
    %37 = vector.load %arg11[%c0_27, %c0_28] : memref<1x1xf32, #tpu.memory_space<vmem>>, vector<1x1xf32>
    %38 = vector.broadcast %37 : vector<1x1xf32> to vector<8x1xf32>
    %39 = arith.addf %36, %38 : vector<8x1xf32>
    %c0_29 = arith.constant 0 : index
    %c0_30 = arith.constant 0 : index
    %40 = vector.load %arg12[%c0_29, %c0_30] : memref<8x1xf32, #tpu.memory_space<vmem>>, vector<8x1xf32>
    tpu.vector_store %arg12[%c0_29, %c0_30], %39 {strides = array<i32>} : memref<8x1xf32, #tpu.memory_space<vmem>>, vector<8x1xf32>,
    return
  }
  func.func @transform_0(%arg0: i32) -> (i32, i32) {
    %c0_i32 = arith.constant 0 : i32
    %c0_i32_0 = arith.constant 0 : i32
    return %arg0, %c0_i32 : i32, i32
  }
  func.func @transform_1(%arg0: i32) -> (i32, i32) {
    %c0_i32 = arith.constant 0 : i32
    %c0_i32_0 = arith.constant 0 : i32
    %c0_i32_1 = arith.constant 0 : i32
    return %c0_i32, %c0_i32_0 : i32, i32
  }
  func.func @transform_2(%arg0: i32) -> (i32, i32) {
    %c0_i32 = arith.constant 0 : i32
    %c0_i32_0 = arith.constant 0 : i32
    %c0_i32_1 = arith.constant 0 : i32
    return %c0_i32, %c0_i32_0 : i32, i32
  }
  func.func @transform_3(%arg0: i32) -> (i32, i32) {
    %c0_i32 = arith.constant 0 : i32
    %c0_i32_0 = arith.constant 0 : i32
    %c0_i32_1 = arith.constant 0 : i32
    return %c0_i32, %c0_i32_0 : i32, i32
  }
  func.func @transform_4(%arg0: i32) -> (i32, i32) {
    %c0_i32 = arith.constant 0 : i32
    %c0_i32_0 = arith.constant 0 : i32
    %c0_i32_1 = arith.constant 0 : i32
    return %c0_i32, %c0_i32_0 : i32, i32
  }
  func.func @transform_5(%arg0: i32) -> (i32, i32) {
    %c0_i32 = arith.constant 0 : i32
    %c0_i32_0 = arith.constant 0 : i32
    %c0_i32_1 = arith.constant 0 : i32
    return %c0_i32, %c0_i32_0 : i32, i32
  }
  func.func @transform_6(%arg0: i32) -> (i32, i32) {
    %c0_i32 = arith.constant 0 : i32
    %c0_i32_0 = arith.constant 0 : i32
    %c0_i32_1 = arith.constant 0 : i32
    return %c0_i32, %c0_i32_0 : i32, i32
  }
  func.func @transform_7(%arg0: i32) -> (i32, i32) {
    %c0_i32 = arith.constant 0 : i32
    %c0_i32_0 = arith.constant 0 : i32
    %c0_i32_1 = arith.constant 0 : i32
    return %c0_i32, %c0_i32_0 : i32, i32
  }
  func.func @transform_8(%arg0: i32) -> (i32, i32) {
    %c0_i32 = arith.constant 0 : i32
    %c0_i32_0 = arith.constant 0 : i32
    %c0_i32_1 = arith.constant 0 : i32
    return %c0_i32, %c0_i32_0 : i32, i32
  }
  func.func @transform_9(%arg0: i32) -> (i32, i32) {
    %c0_i32 = arith.constant 0 : i32
    %c0_i32_0 = arith.constant 0 : i32
    %c0_i32_1 = arith.constant 0 : i32
    return %c0_i32, %c0_i32_0 : i32, i32
  }
  func.func @transform_10(%arg0: i32) -> (i32, i32) {
    %c0_i32 = arith.constant 0 : i32
    %c0_i32_0 = arith.constant 0 : i32
    %c0_i32_1 = arith.constant 0 : i32
    return %c0_i32, %c0_i32_0 : i32, i32
  }
  func.func @transform_11(%arg0: i32) -> (i32, i32) {
    %c0_i32 = arith.constant 0 : i32
    %c0_i32_0 = arith.constant 0 : i32
    return %arg0, %c0_i32 : i32, i32
  }
}

</mosaic_0001>

<llo_original>
// kernel: qnet_forward.1
$region0: #{qnet_forward.1}
  #allocation0 [shape = 'u32[]', space=smem, size = 0x4, offset = 0x4, fixed_abs, tag = 'smem constant byte address 0x4 - core index']
  #allocation1 [shape = 'u32[72,128]{1,0:T(1,128)}', space=vmem, size = 0x9000, scoped, tag = 'internal scratch']
  #allocation2 [shape = 'f32[1,1]{1,0:T(1,128)S(1)}', space=vmem, size = 0x200, scoped, tag = 'scoped memory for qnet_forward.1']
  %s0 = inlined_call_operand.vmem [shape: bf16[8,16], index: 0, kind: input, shape index: {}]
  %s1 = inlined_call_operand.vmem [shape: bf16[16,128], index: 1, kind: input, shape index: {}]
  %s2 = inlined_call_operand.vmem [shape: f32[1,128], index: 2, kind: input, shape index: {}]
  %s3 = inlined_call_operand.hbm [shape: bf16[128,128], index: 3, kind: input, shape index: {}]
  %s4 = inlined_call_operand.vmem [shape: f32[1,128], index: 4, kind: input, shape index: {}]
  %s5 = inlined_call_operand.hbm [shape: bf16[128,128], index: 5, kind: input, shape index: {}]
  %s6 = inlined_call_operand.vmem [shape: f32[1,128], index: 6, kind: input, shape index: {}]
  %s7 = inlined_call_operand.hbm [shape: bf16[128,128], index: 7, kind: input, shape index: {}]
  %s8 = inlined_call_operand.vmem [shape: f32[1,128], index: 8, kind: input, shape index: {}]
  %s9 = inlined_call_operand.vmem [shape: f32[1,128], index: 9, kind: input, shape index: {}]
  %s10 = inlined_call_operand.<no memory space> [shape: f32[1,1], index: 10, kind: input, shape index: {}]
  %s11 = inlined_call_operand.vmem [shape: f32[8,1], index: 11, kind: output, shape index: {}]
  %s12 = sld [smem:[#allocation0]]
  $region66: #{qnet_forward.1} parent=0
    _
  %s14 = ssub.s32 1, %s12
  %s15 = scalar_select 0, %s14, %s12
  %v16 = vstv %s10
  %17 = vst [vmem:[#allocation2] sm:$0x1] %v16
  $region1: #{qnet_forward.1} parent=0
    #allocation3 [shape = 'u8[32768]{0}', space=vmem, size = 0x8000, scoped, tag = 'input window, operand 3, single buffered']
    #allocation4 [shape = 's32[1]{0}', space=sflag, size = 0x4, scoped, tag = 'scoped memory for qnet_forward.1']
    #allocation5 [shape = 'u8[32768]{0}', space=vmem, size = 0x8000, scoped, tag = 'input window, operand 5, single buffered']
    #allocation6 [shape = 's32[1]{0}', space=sflag, size = 0x4, scoped, tag = 'scoped memory for qnet_forward.1']
    #allocation7 [shape = 'u8[32768]{0}', space=vmem, size = 0x8000, scoped, tag = 'input window, operand 7, single buffered']
    %18 = vsyncpa [#allocation4], 0
    %19 = vsyncpa [#allocation6], 0
    // Predicated region
    $region2: #{qnet_forward.1} parent=1 // pred_check
      _
    $region3: #{qnet_forward.1} parent=1 // pred_check_branch
      %21 = sbr.rel (0) target = $region5
    $region4: #{qnet_forward.1} parent=1 // pred_region
      _
    $region5: #{qnet_forward.1} parent=1 // pred_fallthru
      _
    // Predicated region
    $region6: #{qnet_forward.1} parent=1 // pred_check
      _
    $region7: #{qnet_forward.1} parent=1 // pred_check_branch
      %23 = sbr.rel (0) target = $region9
    $region8: #{qnet_forward.1} parent=1 // pred_region
      _
    $region9: #{qnet_forward.1} parent=1 // pred_fallthru
      _
    // Predicated region
    $region10: #{qnet_forward.1} parent=1 // pred_check
      _
    $region11: #{qnet_forward.1} parent=1 // pred_check_branch
      %25 = sbr.rel (0) target = $region13
    $region12: #{qnet_forward.1} parent=1 // pred_region
      _
    $region13: #{qnet_forward.1} parent=1 // pred_fallthru
      _
    // Predicated region
    $region14: #{qnet_forward.1} parent=1 // pred_check
      _
    $region15: #{qnet_forward.1} parent=1 // pred_check_branch
      %27 = sbr.rel (0) target = $region17
    $region16: #{qnet_forward.1} parent=1 // pred_region
      %29 = vsyncadd [#allocation4], 0
      %s30 = sshll.u32 %s3, 4
      %s31 = int_to_ptr.hbm [resolvable:$true] %s30
      %s32 = sshll.u32 [#allocation3], 4
      %s33 = int_to_ptr.vmem [resolvable:$true] %s32
      %38 = dma.hbm_to_vmem [thread:$0]  %s31, 1024, %s33, [#allocation4], 64, 64, 4
    $region17: #{qnet_forward.1} parent=1 // pred_fallthru
      _
    // Predicated region
    $region18: #{qnet_forward.1} parent=1 // pred_check
      _
    $region19: #{qnet_forward.1} parent=1 // pred_check_branch
      %40 = sbr.rel (0) target = $region21
    $region20: #{qnet_forward.1} parent=1 // pred_region
      _
    $region21: #{qnet_forward.1} parent=1 // pred_fallthru
      _
    // Predicated region
    $region22: #{qnet_forward.1} parent=1 // pred_check
      _
    $region23: #{qnet_forward.1} parent=1 // pred_check_branch
      %42 = sbr.rel (0) target = $region25
    $region24: #{qnet_forward.1} parent=1 // pred_region
      %44 = vsyncadd [#allocation6], 0
      %s45 = sshll.u32 %s5, 4
      %s46 = int_to_ptr.hbm [resolvable:$true] %s45
      %s47 = sshll.u32 [#allocation5], 4
      %s48 = int_to_ptr.vmem [resolvable:$true] %s47
      %53 = dma.hbm_to_vmem [thread:$0]  %s46, 1024, %s48, [#allocation6], 64, 64, 4
    $region25: #{qnet_forward.1} parent=1 // pred_fallthru
      _
    // Predicated region
    $region26: #{qnet_forward.1} parent=1 // pred_check
      _
    $region27: #{qnet_forward.1} parent=1 // pred_check_branch
      %55 = sbr.rel (0) target = $region29
    $region28: #{qnet_forward.1} parent=1 // pred_region
      _
    $region29: #{qnet_forward.1} parent=1 // pred_fallthru
      _
    // Predicated region
    $region30: #{qnet_forward.1} parent=1 // pred_check
      _
    $region31: #{qnet_forward.1} parent=1 // pred_check_branch
      %57 = sbr.rel (0) target = $region33
    $region32: #{qnet_forward.1} parent=1 // pred_region
      %59 = vsyncadd [#allocation6], 0
      %s60 = sshll.u32 %s7, 4
      %s61 = int_to_ptr.hbm [resolvable:$true] %s60
      %s62 = sshll.u32 [#allocation7], 4
      %s63 = int_to_ptr.vmem [resolvable:$true] %s62
      %68 = dma.hbm_to_vmem [thread:$0]  %s61, 1024, %s63, [#allocation6], 64, 64, 4
    $region33: #{qnet_forward.1} parent=1 // pred_fallthru
      _
    // Predicated region
    $region34: #{qnet_forward.1} parent=1 // pred_check
      _
    $region35: #{qnet_forward.1} parent=1 // pred_check_branch
      %70 = sbr.rel (0) target = $region37
    $region36: #{qnet_forward.1} parent=1 // pred_region
      _
    $region37: #{qnet_forward.1} parent=1 // pred_fallthru
      _
    // Predicated region
    $region38: #{qnet_forward.1} parent=1 // pred_check
      _
    $region39: #{qnet_forward.1} parent=1 // pred_check_branch
      %72 = sbr.rel (0) target = $region41
    $region40: #{qnet_forward.1} parent=1 // pred_region
      _
    $region41: #{qnet_forward.1} parent=1 // pred_fallthru
      _
    // Predicated region
    $region42: #{qnet_forward.1} parent=1 // pred_check
      _
    $region43: #{qnet_forward.1} parent=1 // pred_check_branch
      %74 = sbr.rel (0) target = $region45
    $region44: #{qnet_forward.1} parent=1 // pred_region
      _
    $region45: #{qnet_forward.1} parent=1 // pred_fallthru
      _
    // Predicated region
    $region46: #{qnet_forward.1} parent=1 // pred_check
      _
    $region47: #{qnet_forward.1} parent=1 // pred_check_branch
      %76 = sbr.rel (0) target = $region49
    $region48: #{qnet_forward.1} parent=1 // pred_region
      %78 = dma.done [#allocation4], 1024
    $region49: #{qnet_forward.1} parent=1 // pred_fallthru
      _
    // Predicated region
    $region50: #{qnet_forward.1} parent=1 // pred_check
      _
    $region51: #{qnet_forward.1} parent=1 // pred_check_branch
      %80 = sbr.rel (0) target = $region53
    $region52: #{qnet_forward.1} parent=1 // pred_region
      %82 = dma.done [#allocation6], 1024
    $region53: #{qnet_forward.1} parent=1 // pred_fallthru
      _
    // Predicated region
    $region54: #{qnet_forward.1} parent=1 // pred_check
      _
    $region55: #{qnet_forward.1} parent=1 // pred_check_branch
      %84 = sbr.rel (0) target = $region57
    $region56: #{qnet_forward.1} parent=1 // pred_region
      %86 = dma.done [#allocation6], 1024
    $region57: #{qnet_forward.1} parent=1 // pred_fallthru
      _
    %v88 = vld [vmem:[%s0] sm:$0xf]
    %v89 = vld [vmem:[%s1] sm:$0xf]
    %v90 = vld [vmem:[%s1 + $0x4] sm:$0xf]
    %v91 = vld [vmem:[%s2] sm:$0x1]
    %v93 = vperm.slane %v91, 0
    %v97 = vunpack.c.l.b16 %v89
    %v98 = vunpack.c.l.b16 %v90
    %v99 = vpack.c.b16 %v98, %v97
    %vm101 = vcmask 130048
    %v103 = vsel %vm101, %v88, 0
    %105 = vmatpush.bf16.msra.mxu0 0
    %106 = vmatpush.bf16.msra.mxu0 0
    %107 = vmatpush.bf16.msra.mxu0 0
    %108 = vmatpush.bf16.msra.mxu0 0
    %109 = vmatpush.bf16.msra.mxu0 0
    %110 = vmatpush.bf16.msra.mxu0 0
    %111 = vmatpush.bf16.msra.mxu0 0
    %112 = vmatpush.bf16.msra.mxu0 %v99
    %113 = vmatmul.bf16.gmra.mxu0 %v103
    %v114 = vpop.f32.mrf.mxu0
    %v115 = vadd.f32 %v93, %v114
    %v116 = vpop.f32.mrf.mxu0
    %117 = vdwg.mxu0
    %v118 = vmax.f32 %v115, 0.0
    %v119 = vpack.c.bf16 %v118, %v118
    %v120 = vld [vmem:[#allocation3] sm:$0xf]
    %v121 = vld [vmem:[#allocation3 + $0x4] sm:$0xf]
    %v122 = vld [vmem:[#allocation3 + $0x8] sm:$0xf]
    %v123 = vld [vmem:[#allocation3 + $0xc] sm:$0xf]
    %v124 = vld [vmem:[#allocation3 + $0x10] sm:$0xf]
    %v125 = vld [vmem:[#allocation3 + $0x14] sm:$0xf]
    %v126 = vld [vmem:[#allocation3 + $0x18] sm:$0xf]
    %v127 = vld [vmem:[#allocation3 + $0x1c] sm:$0xf]
    %v128 = vld [vmem:[#allocation3 + $0x20] sm:$0xf]
    %v129 = vld [vmem:[#allocation3 + $0x24] sm:$0xf]
    %v130 = vld [vmem:[#allocation3 + $0x28] sm:$0xf]
    %v131 = vld [vmem:[#allocation3 + $0x2c] sm:$0xf]
    %v132 = vld [vmem:[#allocation3 + $0x30] sm:$0xf]
    %v133 = vld [vmem:[#allocation3 + $0x34] sm:$0xf]
    %v134 = vld [vmem:[#allocation3 + $0x38] sm:$0xf]
    %v135 = vld [vmem:[#allocation3 + $0x3c] sm:$0xf]
    %v136 = vld [vmem:[%s4] sm:$0x1]
    %v138 = vperm.slane %v136, 0
    %v156 = vunpack.c.l.b16 %v120
    %v157 = vunpack.c.l.b16 %v121
    %v158 = vunpack.c.l.b16 %v122
    %v159 = vunpack.c.l.b16 %v123
    %v160 = vunpack.c.l.b16 %v124
    %v161 = vunpack.c.l.b16 %v125
    %v162 = vunpack.c.l.b16 %v126
    %v163 = vunpack.c.l.b16 %v127
    %v164 = vunpack.c.l.b16 %v128
    %v165 = vunpack.c.l.b16 %v129
    %v166 = vunpack.c.l.b16 %v130
    %v167 = vunpack.c.l.b16 %v131
    %v168 = vunpack.c.l.b16 %v132
    %v169 = vunpack.c.l.b16 %v133
    %v170 = vunpack.c.l.b16 %v134
    %v171 = vunpack.c.l.b16 %v135
    %v172 = vpack.c.b16 %v157, %v156
    %v173 = vpack.c.b16 %v159, %v158
    %v174 = vpack.c.b16 %v161, %v160
    %v175 = vpack.c.b16 %v163, %v162
    %v176 = vpack.c.b16 %v165, %v164
    %v177 = vpack.c.b16 %v167, %v166
    %v178 = vpack.c.b16 %v169, %v168
    %v179 = vpack.c.b16 %v171, %v170
    %188 = vmatpush.bf16.msra.mxu0 %v179
    %189 = vmatpush.bf16.msra.mxu0 %v178
    %190 = vmatpush.bf16.msra.mxu0 %v177
    %191 = vmatpush.bf16.msra.mxu0 %v176
    %192 = vmatpush.bf16.msra.mxu0 %v175
    %193 = vmatpush.bf16.msra.mxu0 %v174
    %194 = vmatpush.bf16.msra.mxu0 %v173
    %195 = vmatpush.bf16.msra.mxu0 %v172
    %196 = vmatmul.bf16.gmra.mxu0 %v119
    %v197 = vpop.f32.mrf.mxu0
    %v198 = vadd.f32 %v138, %v197
    %v199 = vpop.f32.mrf.mxu0
    %200 = vdwg.mxu0
    %v201 = vmax.f32 %v198, 0.0
    %v202 = vpack.c.bf16 %v201, %v201
    %v203 = vld [vmem:[#allocation5] sm:$0xf]
    %v204 = vld [vmem:[#allocation5 + $0x4] sm:$0xf]
    %v205 = vld [vmem:[#allocation5 + $0x8] sm:$0xf]
    %v206 = vld [vmem:[#allocation5 + $0xc] sm:$0xf]
    %v207 = vld [vmem:[#allocation5 + $0x10] sm:$0xf]
    %v208 = vld [vmem:[#allocation5 + $0x14] sm:$0xf]
    %v209 = vld [vmem:[#allocation5 + $0x18] sm:$0xf]
    %v210 = vld [vmem:[#allocation5 + $0x1c] sm:$0xf]
    %v211 = vld [vmem:[#allocation5 + $0x20] sm:$0xf]
    %v212 = vld [vmem:[#allocation5 + $0x24] sm:$0xf]
    %v213 = vld [vmem:[#allocation5 + $0x28] sm:$0xf]
    %v214 = vld [vmem:[#allocation5 + $0x2c] sm:$0xf]
    %v215 = vld [vmem:[#allocation5 + $0x30] sm:$0xf]
    %v216 = vld [vmem:[#allocation5 + $0x34] sm:$0xf]
    %v217 = vld [vmem:[#allocation5 + $0x38] sm:$0xf]
    %v218 = vld [vmem:[#allocation5 + $0x3c] sm:$0xf]
    %v219 = vld [vmem:[%s6] sm:$0x1]
    %v221 = vperm.slane %v219, 0
    %v239 = vunpack.c.l.b16 %v203
    %v240 = vunpack.c.l.b16 %v204
    %v241 = vunpack.c.l.b16 %v205
    %v242 = vunpack.c.l.b16 %v206
    %v243 = vunpack.c.l.b16 %v207
    %v244 = vunpack.c.l.b16 %v208
    %v245 = vunpack.c.l.b16 %v209
    %v246 = vunpack.c.l.b16 %v210
    %v247 = vunpack.c.l.b16 %v211
    %v248 = vunpack.c.l.b16 %v212
    %v249 = vunpack.c.l.b16 %v213
    %v250 = vunpack.c.l.b16 %v214
    %v251 = vunpack.c.l.b16 %v215
    %v252 = vunpack.c.l.b16 %v216
    %v253 = vunpack.c.l.b16 %v217
    %v254 = vunpack.c.l.b16 %v218
    %v255 = vpack.c.b16 %v240, %v239
    %v256 = vpack.c.b16 %v242, %v241
    %v257 = vpack.c.b16 %v244, %v243
    %v258 = vpack.c.b16 %v246, %v245
    %v259 = vpack.c.b16 %v248, %v247
    %v260 = vpack.c.b16 %v250, %v249
    %v261 = vpack.c.b16 %v252, %v251
    %v262 = vpack.c.b16 %v254, %v253
    %271 = vmatpush.bf16.msra.mxu0 %v262
    %272 = vmatpush.bf16.msra.mxu0 %v261
    %273 = vmatpush.bf16.msra.mxu0 %v260
    %274 = vmatpush.bf16.msra.mxu0 %v259
    %275 = vmatpush.bf16.msra.mxu0 %v258
    %276 = vmatpush.bf16.msra.mxu0 %v257
    %277 = vmatpush.bf16.msra.mxu0 %v256
    %278 = vmatpush.bf16.msra.mxu0 %v255
    %279 = vmatmul.bf16.gmra.mxu0 %v202
    %v280 = vpop.f32.mrf.mxu0
    %v281 = vadd.f32 %v221, %v280
    %v282 = vpop.f32.mrf.mxu0
    %283 = vdwg.mxu0
    %v284 = vmax.f32 %v281, 0.0
    %v285 = vpack.c.bf16 %v284, %v284
    %v286 = vld [vmem:[#allocation7] sm:$0xf]
    %v287 = vld [vmem:[#allocation7 + $0x4] sm:$0xf]
    %v288 = vld [vmem:[#allocation7 + $0x8] sm:$0xf]
    %v289 = vld [vmem:[#allocation7 + $0xc] sm:$0xf]
    %v290 = vld [vmem:[#allocation7 + $0x10] sm:$0xf]
    %v291 = vld [vmem:[#allocation7 + $0x14] sm:$0xf]
    %v292 = vld [vmem:[#allocation7 + $0x18] sm:$0xf]
    %v293 = vld [vmem:[#allocation7 + $0x1c] sm:$0xf]
    %v294 = vld [vmem:[#allocation7 + $0x20] sm:$0xf]
    %v295 = vld [vmem:[#allocation7 + $0x24] sm:$0xf]
    %v296 = vld [vmem:[#allocation7 + $0x28] sm:$0xf]
    %v297 = vld [vmem:[#allocation7 + $0x2c] sm:$0xf]
    %v298 = vld [vmem:[#allocation7 + $0x30] sm:$0xf]
    %v299 = vld [vmem:[#allocation7 + $0x34] sm:$0xf]
    %v300 = vld [vmem:[#allocation7 + $0x38] sm:$0xf]
    %v301 = vld [vmem:[#allocation7 + $0x3c] sm:$0xf]
    %v302 = vld [vmem:[%s8] sm:$0x1]
    %v304 = vperm.slane %v302, 0
    %v322 = vunpack.c.l.b16 %v286
    %v323 = vunpack.c.l.b16 %v287
    %v324 = vunpack.c.l.b16 %v288
    %v325 = vunpack.c.l.b16 %v289
    %v326 = vunpack.c.l.b16 %v290
    %v327 = vunpack.c.l.b16 %v291
    %v328 = vunpack.c.l.b16 %v292
    %v329 = vunpack.c.l.b16 %v293
    %v330 = vunpack.c.l.b16 %v294
    %v331 = vunpack.c.l.b16 %v295
    %v332 = vunpack.c.l.b16 %v296
    %v333 = vunpack.c.l.b16 %v297
    %v334 = vunpack.c.l.b16 %v298
    %v335 = vunpack.c.l.b16 %v299
    %v336 = vunpack.c.l.b16 %v300
    %v337 = vunpack.c.l.b16 %v301
    %v338 = vpack.c.b16 %v323, %v322
    %v339 = vpack.c.b16 %v325, %v324
    %v340 = vpack.c.b16 %v327, %v326
    %v341 = vpack.c.b16 %v329, %v328
    %v342 = vpack.c.b16 %v331, %v330
    %v343 = vpack.c.b16 %v333, %v332
    %v344 = vpack.c.b16 %v335, %v334
    %v345 = vpack.c.b16 %v337, %v336
    %354 = vmatpush.bf16.msra.mxu0 %v345
    %355 = vmatpush.bf16.msra.mxu0 %v344
    %356 = vmatpush.bf16.msra.mxu0 %v343
    %357 = vmatpush.bf16.msra.mxu0 %v342
    %358 = vmatpush.bf16.msra.mxu0 %v341
    %359 = vmatpush.bf16.msra.mxu0 %v340
    %360 = vmatpush.bf16.msra.mxu0 %v339
    %361 = vmatpush.bf16.msra.mxu0 %v338
    %362 = vmatmul.bf16.gmra.mxu0 %v285
    %v363 = vpop.f32.mrf.mxu0
    %v364 = vadd.f32 %v304, %v363
    %v365 = vpop.f32.mrf.mxu0
    %366 = vdwg.mxu0
    %v367 = vmax.f32 %v364, 0.0
    %v368 = vld [vmem:[%s9] sm:$0x1]
    %v370 = vperm.slane %v368, 0
    %v372 = vmul.f32 %v367, %v370
    %373 = vadd.xlane.f32.xlu0 %v372
    %v374 = vpop.xlane.xlu0 %373
    %v375 = vld [vmem:[#allocation2] sm:$0x1]
    %v377 = vperm.slane %v375, 0
    %v379 = vadd.f32 %v374, %v377
    %vm380 = vcmask 7168
    %381 = vst.msk [vmem:[%s11] sm:$0xff] %vm380, %v379
    // Predicated region
    $region58: #{qnet_forward.1} parent=1 // pred_check
      _
    $region59: #{qnet_forward.1} parent=1 // pred_check_branch
      %383 = sbr.rel (0) target = $region61
    $region60: #{qnet_forward.1} parent=1 // pred_region
      _
    $region61: #{qnet_forward.1} parent=1 // pred_fallthru
      _
    // Predicated region
    $region62: #{qnet_forward.1} parent=1 // pred_check
      _
    $region63: #{qnet_forward.1} parent=1 // pred_check_branch
      %385 = sbr.rel (0) target = $region65
    $region64: #{qnet_forward.1} parent=1 // pred_region
      _
    $region65: #{qnet_forward.1} parent=1 // pred_fallthru
      _
    %386 = vsyncpa [#allocation4], 1
    %387 = vsyncpa [#allocation6], 1

</llo_original>
